<compile_context>
chip_gen: v7x
topology: tpu7x:2x2x1
jax: 0.10.0
libtpu: 0.0.40
codegen_flags: <defaults>
</compile_context>

<pallas_src>
import functools

import jax
import jax.numpy as jnp
from jax.experimental import pallas as pl
from jax.experimental.pallas import tpu as pltpu

_LANE = 128
_SUBLANE_F32 = 8
_TARGET_TILE_BYTES = 2 * 1024 * 1024   # ~2 MiB per tile per buffer


def _flow_noiser_kernel(t_ref, tmap_ref, x0_ref, x1_ref, out_ref, *,
                        training_timesteps):
    """One grid step: scalar coefficient lookup + elementwise lerp on a tile.

    t_ref, tmap_ref : SMEM (scalar-prefetch) int32 refs
    x0_ref, x1_ref  : VMEM (tile_rows, 128) tiles in the input's native dtype
    out_ref         : VMEM (tile_rows, 128) tile, same dtype
    """
    t = t_ref[0]
    n_map = tmap_ref.shape[0]                      # static python int
    # Clamp the index so the SMEM read is always in-bounds; the
    # `t >= len(timestep_map)` branch is handled by the jnp.where below.
    idx = jnp.minimum(t, n_map - 1)
    timestep = tmap_ref[idx].astype(jnp.float32)
    coeff_1 = jnp.where(
        t >= n_map,
        jnp.float32(1.0),
        timestep / jnp.float32(training_timesteps),
    )
    coeff_0 = jnp.float32(1.0) - coeff_1
    # f32 arithmetic inside the vregs; HBM traffic stays in native dtype.
    x0 = x0_ref[...].astype(jnp.float32)
    x1 = x1_ref[...].astype(jnp.float32)
    out_ref[...] = (coeff_0 * x0 + coeff_1 * x1).astype(out_ref.dtype)


class FlowNoiser:
    """JAX/Pallas port of the SDSB FlowNoiser (forward pass)."""

    def __init__(self, training_timesteps: int, inference_timesteps: int,
                 gamma_min: float, gamma_max: float,
                 simplify: bool = True, reparam: str = None):
        self.gamma_min = gamma_min
        self.gamma_max = gamma_max
        self.training_timesteps = training_timesteps
        self.inference_timesteps = inference_timesteps
        self.training_timestep_map = jnp.arange(
            0, training_timesteps, 1, dtype=jnp.int32)
        self.inference_timestep_map = jnp.arange(
            0, training_timesteps, training_timesteps // inference_timesteps,
            dtype=jnp.int32)
        self.num_timesteps = training_timesteps
        self.timestep_map = self.training_timestep_map
        if simplify and reparam is not None and reparam not in ("FR", "TR"):
            raise ValueError(f"reparam must be 'FR' or 'TR', got: {reparam}")
        self.simplify = simplify
        self.reparam = reparam
        # TODO(synk): trajectory / forward_F / trajectory_F (RNG + host loops)
        # are orchestration around this same lerp and are not ported here.

    def train(self, mode: bool = True):
        self.num_timesteps = (self.training_timesteps if mode
                              else self.inference_timesteps)
        self.timestep_map = (self.training_timestep_map if mode
                             else self.inference_timestep_map)

    def eval(self):
        self.train(mode=False)

    # ---- pure-JAX reference (for correctness checking) -------------------
    def forward_ref(self, x_0, x_1, t):
        if hasattr(t, "shape") and getattr(t, "ndim", 0) > 0:
            t = int(jnp.max(t))
        t = int(t)
        if t >= int(self.timestep_map.shape[0]):
            c0, c1 = 0.0, 1.0
        else:
            c1 = float(self.timestep_map[t]) / self.training_timesteps
            c0 = 1.0 - c1
        out = c0 * x_0.astype(jnp.float32) + c1 * x_1.astype(jnp.float32)
        return out.astype(x_0.dtype)

    # ---- Pallas forward ---------------------------------------------------
    def forward(self, x_0, x_1, t):
        # t may be an int or an integer array -> reduce to its max (scalar),
        # matching `t = t.max()` in the PyTorch coefficient().
        if hasattr(t, "shape") and getattr(t, "ndim", 0) > 0:
            t = jnp.max(t)
        t_arr = jnp.asarray(t, dtype=jnp.int32).reshape((1,))

        orig_shape = x_0.shape
        dtype = x_0.dtype
        itemsize = jnp.dtype(dtype).itemsize
        # sublane packing: 8 rows for 32-bit, 16 for 16-bit, 32 for 8-bit.
        sublane = max(_SUBLANE_F32, 32 // itemsize)

        n = x_0.size
        align = sublane * _LANE
        pad = (-n) % align

        x0f = x_0.reshape(-1)
        x1f = x_1.reshape(-1)
        if pad:
            # Rare ragged-tail case only; common NCHW shapes hit pad == 0 and
            # take the copy-free path.
            x0f = jnp.pad(x0f, (0, pad))
            x1f = jnp.pad(x1f, (0, pad))
        rows = (n + pad) // _LANE
        x0f = x0f.reshape(rows, _LANE)
        x1f = x1f.reshape(rows, _LANE)

        # Multi-MiB tiles: ~2 MiB per tile, capped at the array size; rows and
        # the target are both multiples of `sublane`, so tile_rows is too.
        target_rows = max(
            sublane,
            (_TARGET_TILE_BYTES // (_LANE * itemsize)) // sublane * sublane)
        tile_rows = min(target_rows, rows)
        grid = (pl.cdiv(rows, tile_rows),)

        kernel = functools.partial(
            _flow_noiser_kernel, training_timesteps=self.training_timesteps)

        # index_maps receive the two scalar-prefetch refs (t, timestep_map)
        # as trailing positional args; the tiling only depends on the grid id.
        tile_spec = pl.BlockSpec((tile_rows, _LANE),
                                 lambda i, t_ref, tmap_ref: (i, 0))

        out = pl.pallas_call(
            kernel,
            out_shape=jax.ShapeDtypeStruct((rows, _LANE), dtype),
            grid_spec=pltpu.PrefetchScalarGridSpec(
                num_scalar_prefetch=2,
                grid=grid,
                in_specs=[tile_spec, tile_spec],
                out_specs=tile_spec,
            ),
            compiler_params=pltpu.CompilerParams(
                dimension_semantics=("parallel",)),
            cost_estimate=pl.CostEstimate(
                flops=3 * n,
                transcendentals=0,
                bytes_accessed=3 * n * itemsize),
        )(t_arr, self.timestep_map, x0f, x1f)

        if pad:
            out = out.reshape(-1)[:n]
        return out.reshape(orig_shape)

    __call__ = forward


if __name__ == "__main__":
    # Small shapes consistent with the module's elementwise forward: NCHW.
    N, C, H, W = 2, 4, 16, 16
    key = jax.random.PRNGKey(0)
    k0, k1, k2, k3 = jax.random.split(key, 4)
    x_0 = jax.random.normal(k0, (N, C, H, W), dtype=jnp.float32)
    x_1 = jax.random.normal(k1, (N, C, H, W), dtype=jnp.float32)

    noiser = FlowNoiser(training_timesteps=16, inference_timesteps=8,
                        gamma_min=1e-4, gamma_max=1e-2)

    # per-sample timestep tensor, as used in trajectory_F (ones * t)
    t = jnp.full((N,), 5, dtype=jnp.int32)

    x_t = jax.block_until_ready(noiser(x_0, x_1, t))
    ref = noiser.forward_ref(x_0, x_1, t)
    assert x_t.shape == x_0.shape and x_t.dtype == x_0.dtype
    assert jnp.allclose(x_t, ref, atol=1e-6, rtol=1e-6)

    # t >= len(timestep_map) branch (coeff_0=0, coeff_1=1)
    x_end = jax.block_until_ready(noiser(x_0, x_1, 100))
    assert jnp.allclose(x_end, x_1, atol=1e-6, rtol=1e-6)

    # native-dtype (bf16) streaming path — kernel reads/writes bf16 directly
    xb0 = x_0.astype(jnp.bfloat16)
    xb1 = x_1.astype(jnp.bfloat16)
    xb_t = jax.block_until_ready(noiser(xb0, xb1, t))
    refb = noiser.forward_ref(xb0, xb1, t)
    assert xb_t.dtype == jnp.bfloat16
    assert jnp.allclose(xb_t.astype(jnp.float32), refb.astype(jnp.float32),
                        atol=1e-2, rtol=1e-2)

    # ragged / padded-tail path (size not a multiple of 8*128)
    xr0 = jax.random.normal(k2, (3, 5, 7, 11), dtype=jnp.float32)
    xr1 = jax.random.normal(k3, (3, 5, 7, 11), dtype=jnp.float32)
    xr_t = jax.block_until_ready(noiser(xr0, xr1, 3))
    refr = noiser.forward_ref(xr0, xr1, 3)
    assert xr_t.shape == xr0.shape
    assert jnp.allclose(xr_t, refr, atol=1e-6, rtol=1e-6)

    print("KERNEL_OK")
</pallas_src>

<mosaic_0001>
module attributes {stable_mosaic.version = 11 : i64} {
  func.func @_flow_noiser_kernel(%arg0: i32, %arg1: memref<1xi32, #tpu.memory_space<smem>>, %arg2: memref<16xi32, #tpu.memory_space<smem>>, %arg3: memref<16x128xf32, #tpu.memory_space<vmem>>, %arg4: memref<16x128xf32, #tpu.memory_space<vmem>>, %arg5: memref<16x128xf32, #tpu.memory_space<vmem>>) attributes {dimension_semantics = [#tpu.dimension_semantics<parallel>], iteration_bounds = array<i64: 1>, scalar_prefetch = 2 : i64, scratch_operands = 0 : i64, tpu.core_type = #tpu.core_type<tc>, window_params = [{transform_indices = @transform_0, window_bounds = array<i64: 16, 128>}, {transform_indices = @transform_1, window_bounds = array<i64: 16, 128>}, {transform_indices = @transform_2, window_bounds = array<i64: 16, 128>}]} {
    %c0 = arith.constant 0 : index
    %0 = memref.load %arg1[%c0] : memref<1xi32, #tpu.memory_space<smem>>
    %c15_i32 = arith.constant 15 : i32
    %1 = arith.minsi %0, %c15_i32 : i32
    %2 = arith.index_cast %1 : i32 to index
    %3 = memref.load %arg2[%2] : memref<16xi32, #tpu.memory_space<smem>>
    %4 = arith.sitofp %3 : i32 to f32
    %c16_i32 = arith.constant 16 : i32
    %5 = arith.cmpi sge, %0, %c16_i32 : i32
    %cst = arith.constant 1.600000e+01 : f32
    %6 = arith.divf %4, %cst : f32
    %cst_0 = arith.constant 1.000000e+00 : f32
    %7 = arith.select %5, %cst_0, %6 : f32
    %cst_1 = arith.constant 1.000000e+00 : f32
    %8 = arith.subf %cst_1, %7 : f32
    %c0_2 = arith.constant 0 : index
    %c0_3 = arith.constant 0 : index
    %9 = vector.load %arg3[%c0_2, %c0_3] : memref<16x128xf32, #tpu.memory_space<vmem>>, vector<16x128xf32>
    %c0_4 = arith.constant 0 : index
    %c0_5 = arith.constant 0 : index
    %10 = vector.load %arg4[%c0_4, %c0_5] : memref<16x128xf32, #tpu.memory_space<vmem>>, vector<16x128xf32>
    %11 = vector.broadcast %8 : f32 to vector<16x128xf32>
    %12 = arith.mulf %11, %9 : vector<16x128xf32>
    %13 = vector.broadcast %7 : f32 to vector<16x128xf32>
    %14 = arith.mulf %13, %10 : vector<16x128xf32>
    %15 = arith.addf %12, %14 : vector<16x128xf32>
    %c0_6 = arith.constant 0 : index
    %c0_7 = arith.constant 0 : index
    %16 = vector.load %arg5[%c0_6, %c0_7] : memref<16x128xf32, #tpu.memory_space<vmem>>, vector<16x128xf32>
    tpu.vector_store %arg5[%c0_6, %c0_7], %15 {strides = array<i32>} : memref<16x128xf32, #tpu.memory_space<vmem>>, vector<16x128xf32>,
    return
  }
  func.func @transform_0(%arg0: i32, %arg1: memref<1xi32, #tpu.memory_space<smem>>, %arg2: memref<16xi32, #tpu.memory_space<smem>>) -> (i32, i32) {
    %c0_i32 = arith.constant 0 : i32
    %c0_i32_0 = arith.constant 0 : i32
    return %arg0, %c0_i32 : i32, i32
  }
  func.func @transform_1(%arg0: i32, %arg1: memref<1xi32, #tpu.memory_space<smem>>, %arg2: memref<16xi32, #tpu.memory_space<smem>>) -> (i32, i32) {
    %c0_i32 = arith.constant 0 : i32
    %c0_i32_0 = arith.constant 0 : i32
    return %arg0, %c0_i32 : i32, i32
  }
  func.func @transform_2(%arg0: i32, %arg1: memref<1xi32, #tpu.memory_space<smem>>, %arg2: memref<16xi32, #tpu.memory_space<smem>>) -> (i32, i32) {
    %c0_i32 = arith.constant 0 : i32
    %c0_i32_0 = arith.constant 0 : i32
    return %arg0, %c0_i32 : i32, i32
  }
}

</mosaic_0001>

<llo_original>
// kernel: tpu_custom_call.1
$region0: #{tpu_custom_call.1}
  #allocation0 [shape = 'u32[]', space=smem, size = 0x4, offset = 0x4, fixed_abs, tag = 'smem constant byte address 0x4 - core index']
  #allocation1 [shape = 'u32[144,128]{1,0:T(1,128)}', space=vmem, size = 0x12000, scoped, tag = 'internal scratch']
  #allocation2 [shape = 's32[1]{0}', space=sflag, size = 0x4, scoped, tag = 'scoped memory for tpu_custom_call.1']
  #allocation3 [shape = 's32[1]{0:T(128)S(6)}', space=smem, size = 0x200, scoped, tag = 'prefetched SMEM operand 0']
  #allocation4 [shape = 'u8[512]{0}', space=smem, size = 0x200, scoped, tag = 'prefetched SMEM operand 1']
  %s0 = inlined_call_operand.<no memory space> [shape: s32[1], index: 0, kind: input, shape index: {}]
  %s1 = inlined_call_operand.vmem [shape: s32[16], index: 1, kind: input, shape index: {}]
  %s2 = inlined_call_operand.hbm [shape: f32[16,128], index: 2, kind: input, shape index: {}]
  %s3 = inlined_call_operand.hbm [shape: f32[16,128], index: 3, kind: input, shape index: {}]
  %s4 = inlined_call_operand.hbm [shape: f32[16,128], index: 4, kind: output, shape index: {}]
  %s5 = sld [smem:[#allocation0]]
  $region26: #{tpu_custom_call.1} parent=0
    _
  %s7 = ssub.s32 1, %s5
  %s8 = scalar_select 0, %s7, %s5
  %9 = sst [smem:[#allocation3]] %s0
  %s10 = sshll.u32 %s1, 4
  %s11 = int_to_ptr.vmem [resolvable:$true] %s10
  %13 = dma.vmem_to_smem %s11, 16, [#allocation4], [#allocation2]
  %14 = dma.done [#allocation2], 16
  %15 = sfence
  $region1: #{tpu_custom_call.1} parent=0
    #allocation5 [shape = 'u8[8192]{0}', space=vmem, size = 0x2000, scoped, tag = 'input window, operand 2, single buffered']
    #allocation6 [shape = 's32[1]{0}', space=sflag, size = 0x4, scoped, tag = 'scoped memory for tpu_custom_call.1']
    #allocation7 [shape = 's32[1]{0}', space=sflag, size = 0x4, scoped, tag = 'scoped memory for tpu_custom_call.1']
    #allocation8 [shape = 'u8[8192]{0}', space=vmem, size = 0x2000, scoped, tag = 'input window, operand 3, single buffered']
    #allocation9 [shape = 's32[1]{0}', space=sflag, size = 0x4, scoped, tag = 'scoped memory for tpu_custom_call.1']
    #allocation10 [shape = 'u8[8192]{0}', space=vmem, size = 0x2000, scoped, tag = 'output window, operand 0, single buffered']
    %16 = vsyncpa [#allocation6], 0
    %17 = vsyncpa [#allocation9], 0
    %18 = vsyncpa [#allocation7], 0
    // Predicated region
    $region2: #{tpu_custom_call.1} parent=1 // pred_check
      _
    $region3: #{tpu_custom_call.1} parent=1 // pred_check_branch
      %20 = sbr.rel (0) target = $region5
    $region4: #{tpu_custom_call.1} parent=1 // pred_region
      %s22 = ssub.s32 256, 256
      %23 = vsyncadd [#allocation6], %s22
      %s24 = sshll.u32 [#allocation5], 4
      %s25 = int_to_ptr.vmem [resolvable:$true] %s24
      %30 = dma.hbm_to_vmem [thread:$0]  %s2, 256, %s25, [#allocation6], 128, 128, 8
    $region5: #{tpu_custom_call.1} parent=1 // pred_fallthru
      _
    // Predicated region
    $region6: #{tpu_custom_call.1} parent=1 // pred_check
      _
    $region7: #{tpu_custom_call.1} parent=1 // pred_check_branch
      %32 = sbr.rel (0) target = $region9
    $region8: #{tpu_custom_call.1} parent=1 // pred_region
      %s34 = ssub.s32 256, 256
      %35 = vsyncadd [#allocation9], %s34
      %s36 = sshll.u32 [#allocation8], 4
      %s37 = int_to_ptr.vmem [resolvable:$true] %s36
      %42 = dma.hbm_to_vmem [thread:$0]  %s3, 256, %s37, [#allocation9], 128, 128, 8
    $region9: #{tpu_custom_call.1} parent=1 // pred_fallthru
      _
    // Predicated region
    $region10: #{tpu_custom_call.1} parent=1 // pred_check
      _
    $region11: #{tpu_custom_call.1} parent=1 // pred_check_branch
      %44 = sbr.rel (0) target = $region13
    $region12: #{tpu_custom_call.1} parent=1 // pred_region
      %45 = dma.done [#allocation6], 256
    $region13: #{tpu_custom_call.1} parent=1 // pred_fallthru
      _
    // Predicated region
    $region14: #{tpu_custom_call.1} parent=1 // pred_check
      _
    $region15: #{tpu_custom_call.1} parent=1 // pred_check_branch
      %47 = sbr.rel (0) target = $region17
    $region16: #{tpu_custom_call.1} parent=1 // pred_region
      %48 = dma.done [#allocation9], 256
    $region17: #{tpu_custom_call.1} parent=1 // pred_fallthru
      _
    %s49 = sld [smem:[#allocation3]]
    %p50 = scmp.lt.s32.totalorder %s49, 15
    %s51 = scalar_select %p50, %s49, 15
    %s52 = sld [smem:[#allocation4 + %s51]]
    %s53 = scvt.s32.f32 %s52
    %p54 = scmp.ge.s32.totalorder %s49, 16
    %v55 = vrcp.pop 16.0
    %s56 = vtos %v55
    %s57 = smul.f32 %s53, %s56
    %s58 = scalar_select %p54, 1.0, %s57
    %s59 = ssub.f32 1.0, %s58
    %v60 = vld [vmem:[#allocation5] sm:$0xff]
    %v61 = vld [vmem:[#allocation5 + $0x8] sm:$0xff]
    %v62 = vld [vmem:[#allocation8] sm:$0xff]
    %v63 = vld [vmem:[#allocation8 + $0x8] sm:$0xff]
    %v64 = vstv %s59
    %v65 = vmul.f32 %v64, %v60
    %v66 = vmul.f32 %v64, %v61
    %v67 = vstv %s58
    %v68 = vmul.f32 %v67, %v62
    %v69 = vmul.f32 %v67, %v63
    %v70 = vadd.f32 %v65, %v68
    %v71 = vadd.f32 %v66, %v69
    %72 = vst [vmem:[#allocation10] sm:$0xff] %v70
    %73 = vst [vmem:[#allocation10 + $0x8] sm:$0xff] %v71
    // Predicated region
    $region18: #{tpu_custom_call.1} parent=1 // pred_check
      _
    $region19: #{tpu_custom_call.1} parent=1 // pred_check_branch
      %75 = sbr.rel (0) target = $region21
    $region20: #{tpu_custom_call.1} parent=1 // pred_region
      %s77 = ssub.s32 256, 256
      %78 = vsyncadd [#allocation7], %s77
      %s79 = sshll.u32 [#allocation10], 4
      %s80 = int_to_ptr.vmem [resolvable:$true] %s79
      %85 = dma.vmem_to_hbm [thread:$0]  %s80, 256, %s4, [#allocation7], 128, 128, 8
    $region21: #{tpu_custom_call.1} parent=1 // pred_fallthru
      _
    // Predicated region
    $region22: #{tpu_custom_call.1} parent=1 // pred_check
      _
    $region23: #{tpu_custom_call.1} parent=1 // pred_check_branch
      %87 = sbr.rel (0) target = $region25
    $region24: #{tpu_custom_call.1} parent=1 // pred_region
      %88 = dma.done [#allocation7], 256
    $region25: #{tpu_custom_call.1} parent=1 // pred_fallthru
      _
    %89 = vsyncpa [#allocation6], 1
    %90 = vsyncpa [#allocation9], 1
    %91 = vsyncpa [#allocation7], 1

</llo_original>
